<compile_context>
chip_gen: v6e
topology: v6e:2x2x1
jax: 0.10.0
libtpu: 0.0.40
codegen_flags: <defaults>
</compile_context>

<pallas_src>
import jax
import jax.numpy as jnp
from jax.experimental import pallas as pl
from jax.experimental.pallas import tpu as pltpu

INPUT_DIM = 6
HIDDEN_DIM = 80
OUTPUT_DIM = 7

# Padded feature dims (lane axis).  Node/graph pads are computed per call.
DIN_PAD = 8      # input feature dim 6 -> 8
H_PAD = 128      # hidden dim 80 -> 128 (lane-dense activations)
DOUT_PAD = 128   # output dim 7 -> 128 (lane-dense output store)


def _round_up(v, m):
    return max(m, ((v + m - 1) // m) * m)


def _graphconv_model_kernel(a_ref, p_ref, x_ref,
                            w1r_ref, w1s_ref, b1_ref,
                            w2f_ref, b2_ref,
                            wl_ref, bl_ref,
                            o_ref):
    bf16 = jnp.bfloat16
    a = a_ref[...]                      # bf16 [N, N]
    x = x_ref[...]                      # bf16 [N, DIN_PAD]

    # ---- GraphConv 1: (A@x) @ W1_rel^T + x @ W1_root^T + b1 ----
    # Two tiny dots (contraction depth 8); fusing would only add a
    # non-tile-aligned lane concat with no MXU pass savings.
    agg1 = jnp.dot(a, x, preferred_element_type=jnp.float32)
    h1 = (jnp.dot(agg1.astype(bf16), w1r_ref[...],
                  preferred_element_type=jnp.float32)
          + jnp.dot(x, w1s_ref[...], preferred_element_type=jnp.float32)
          + b1_ref[...])
    h1 = jnp.maximum(h1, 0.0)           # f32 ReLU; dropout (eval) = identity
    h1b = h1.astype(bf16)

    # ---- GraphConv 2 (fused, register concat): [A@h1 | h1] @ [W2_rel^T ; W2_root^T] ----
    agg2 = jnp.dot(a, h1b, preferred_element_type=jnp.float32)
    f2 = jnp.concatenate([agg2.astype(bf16), h1b], axis=1)   # bf16 [N, 256]
    h2 = jnp.dot(f2, w2f_ref[...],
                 preferred_element_type=jnp.float32) + b2_ref[...]
    h2 = jnp.maximum(h2, 0.0)

    # ---- global_add_pool: P[graph, node] @ h2 ; dropout (eval) = identity ----
    pooled = jnp.dot(p_ref[...], h2.astype(bf16),
                     preferred_element_type=jnp.float32)

    # ---- final Linear ----
    o_ref[...] = jnp.dot(pooled.astype(bf16), wl_ref[...],
                         preferred_element_type=jnp.float32) + bl_ref[...]


def _pick_vmem_limit(needed_bytes):
    """Explicit scoped-VMEM limit: needed footprint + headroom, capped safely
    below physical VMEM (56 MiB fallback is safe on v5e/v6e/v7x)."""
    cap = 56 * 1024 * 1024
    try:
        cap = int(pltpu.get_tpu_info().vmem_capacity_bytes * 0.85)
    except Exception:
        pass
    want = int(needed_bytes * 1.5) + (2 << 20)
    return max(min(want, cap), 16 * 1024 * 1024)


def graphconv_model_forward(x, edge_index, edge_type, batch, params,
                            num_graphs):
    """Pure-JAX glue (densify + pad) + one Pallas kernel call.

    x:          [N, INPUT_DIM]  node features (float32)
    edge_index: [2, E]  int32, row 0 = source, row 1 = target
    edge_type:  [E]     edge weights (cast to float, as PyG does)
    batch:      [N]     int32 graph id per node (0 <= batch[i] < num_graphs)
    """
    assert x.shape[1] == INPUT_DIM
    assert edge_index.shape[0] == 2
    assert num_graphs >= 1

    n = x.shape[0]
    # Small graphs: 16-multiple (bf16 sublane packing).  Larger: 128-multiple
    # so A tiles are fully lane-dense (no masked vregs in the contraction).
    n_pad = _round_up(n, 16) if n <= 128 else _round_up(n, 128)
    g_pad = _round_up(num_graphs, 8)
    bf16 = jnp.bfloat16

    src, dst = edge_index[0], edge_index[1]
    # Dense adjacency scattered directly into the padded buffer:
    #   agg[i] = sum_{e: dst_e == i} w_e * x[src_e]   =>  A[dst, src] += w
    # Accumulate in f32 (exact for duplicate/parallel edges), cast to bf16 once.
    # Padded rows/cols stay exactly zero (keeps padded nodes inert).
    a_p = (jnp.zeros((n_pad, n_pad), jnp.float32)
           .at[dst, src].add(edge_type.astype(jnp.float32))
           .astype(bf16))
    # Pooling matrix P[g, i] = 1 iff batch[i] == g, also built pre-padded.
    p_p = jnp.zeros((g_pad, n_pad), bf16).at[
        batch, jnp.arange(n)].set(1.0)

    x_p = jnp.pad(x.astype(bf16),
                  ((0, n_pad - n), (0, DIN_PAD - INPUT_DIM)))

    def pad_wt(w, rows, cols):
        # w: [out, in] (torch layout) -> transposed, padded, bf16: [rows, cols]
        wt = w.T.astype(bf16)
        return jnp.pad(wt, ((0, rows - wt.shape[0]), (0, cols - wt.shape[1])))

    w1r = pad_wt(params["w1_rel"], DIN_PAD, H_PAD)     # [8, 128]
    w1s = pad_wt(params["w1_root"], DIN_PAD, H_PAD)    # [8, 128]
    # Fused conv2 weights: stack rel on top of root along the contraction dim.
    w2f = jnp.concatenate([pad_wt(params["w2_rel"], H_PAD, H_PAD),
                           pad_wt(params["w2_root"], H_PAD, H_PAD)], axis=0)
    wl = pad_wt(params["w_lin"], H_PAD, DOUT_PAD)
    b1 = jnp.pad(params["b1"].astype(jnp.float32)[None, :],
                 ((0, 0), (0, H_PAD - HIDDEN_DIM)))
    b2 = jnp.pad(params["b2"].astype(jnp.float32)[None, :],
                 ((0, 0), (0, H_PAD - HIDDEN_DIM)))
    bl = jnp.pad(params["b_lin"].astype(jnp.float32)[None, :],
                 ((0, 0), (0, DOUT_PAD - OUTPUT_DIM)))

    inputs = (a_p, p_p, x_p, w1r, w1s, b1, w2f, b2, wl, bl)

    flops = 2 * (n_pad * n_pad * DIN_PAD            # A @ x
                 + 2 * n_pad * DIN_PAD * H_PAD      # conv1 weight dots
                 + n_pad * n_pad * H_PAD            # A @ h1
                 + n_pad * 2 * H_PAD * H_PAD        # fused conv2 matmul
                 + g_pad * n_pad * H_PAD            # pooling matmul
                 + g_pad * H_PAD * DOUT_PAD)        # final linear
    input_bytes = sum(int(v.size) * v.dtype.itemsize for v in inputs)
    out_bytes = g_pad * DOUT_PAD * 4
    # f32/bf16 temporaries: agg1, h1, agg2, h2 (f32) + h1b, f2, h2b (bf16).
    temp_bytes = n_pad * (4 * (DIN_PAD + 3 * H_PAD) + 2 * 4 * H_PAD) \
        + g_pad * 6 * (H_PAD + DOUT_PAD)
    vmem_limit = _pick_vmem_limit(input_bytes + out_bytes + temp_bytes)

    vmem = pl.BlockSpec(memory_space=pltpu.MemorySpace.VMEM)
    out_p = pl.pallas_call(
        _graphconv_model_kernel,
        out_shape=jax.ShapeDtypeStruct((g_pad, DOUT_PAD), jnp.float32),
        in_specs=[vmem] * len(inputs),
        out_specs=vmem,
        compiler_params=pltpu.CompilerParams(vmem_limit_bytes=vmem_limit),
        cost_estimate=pl.CostEstimate(flops=flops, transcendentals=0,
                                      bytes_accessed=input_bytes + out_bytes),
    )(*inputs)

    return out_p[:num_graphs, :OUTPUT_DIM]


def reference_forward_f32(x, edge_index, edge_type, batch, params, num_graphs):
    """Exact f32 semantics of the PyTorch module (eval mode)."""
    src, dst = edge_index[0], edge_index[1]
    n = x.shape[0]
    a = jnp.zeros((n, n), jnp.float32).at[dst, src].add(
        edge_type.astype(jnp.float32))
    p = jnp.zeros((num_graphs, n), jnp.float32).at[
        batch, jnp.arange(n)].set(1.0)
    h1 = jax.nn.relu((a @ x) @ params["w1_rel"].T
                     + x @ params["w1_root"].T + params["b1"])
    h2 = jax.nn.relu((a @ h1) @ params["w2_rel"].T
                     + h1 @ params["w2_root"].T + params["b2"])
    g = p @ h2
    return g @ params["w_lin"].T + params["b_lin"]


def reference_forward_mixed(x, edge_index, edge_type, batch, params,
                            num_graphs):
    """Mirrors the kernel's precision policy: bf16 MXU operands, f32 accum."""
    bf = jnp.bfloat16

    def dot(u, v):
        return jnp.dot(u.astype(bf), v.astype(bf),
                       preferred_element_type=jnp.float32)

    src, dst = edge_index[0], edge_index[1]
    n = x.shape[0]
    a = jnp.zeros((n, n), jnp.float32).at[dst, src].add(
        edge_type.astype(jnp.float32))
    p = jnp.zeros((num_graphs, n), jnp.float32).at[
        batch, jnp.arange(n)].set(1.0)
    agg1 = dot(a, x)
    h1 = jax.nn.relu(dot(agg1, params["w1_rel"].T)
                     + dot(x, params["w1_root"].T) + params["b1"])
    agg2 = dot(a, h1)
    h2 = jax.nn.relu(dot(agg2, params["w2_rel"].T)
                     + dot(h1, params["w2_root"].T) + params["b2"])
    g = dot(p, h2)
    return dot(g, params["w_lin"].T) + params["b_lin"]


def init_params(key):
    ks = jax.random.split(key, 8)
    s = 0.1
    return {
        "w1_rel": jax.random.normal(ks[0], (HIDDEN_DIM, INPUT_DIM), jnp.float32) * s,
        "w1_root": jax.random.normal(ks[1], (HIDDEN_DIM, INPUT_DIM), jnp.float32) * s,
        "b1": jax.random.normal(ks[2], (HIDDEN_DIM,), jnp.float32) * s,
        "w2_rel": jax.random.normal(ks[3], (HIDDEN_DIM, HIDDEN_DIM), jnp.float32) * s,
        "w2_root": jax.random.normal(ks[4], (HIDDEN_DIM, HIDDEN_DIM), jnp.float32) * s,
        "b2": jax.random.normal(ks[5], (HIDDEN_DIM,), jnp.float32) * s,
        "w_lin": jax.random.normal(ks[6], (OUTPUT_DIM, HIDDEN_DIM), jnp.float32) * s,
        "b_lin": jax.random.normal(ks[7], (OUTPUT_DIM,), jnp.float32) * s,
    }


if __name__ == "__main__":
    key = jax.random.PRNGKey(0)
    k_x, k_p = jax.random.split(key)

    # Small deterministic graph batch: 2 graphs x 8 nodes = 16 nodes.
    num_nodes = 16
    num_graphs = 2
    x = jax.random.normal(k_x, (num_nodes, INPUT_DIM), dtype=jnp.float32)
    batch = jnp.array([0] * 8 + [1] * 8, dtype=jnp.int32)

    # Ring edges within each graph (both directions).
    src_list, dst_list = [], []
    for g in range(num_graphs):
        base = g * 8
        for i in range(8):
            s_, d_ = base + i, base + (i + 1) % 8
            src_list += [s_, d_]
            dst_list += [d_, s_]
    edge_index = jnp.array([src_list, dst_list], dtype=jnp.int32)
    num_edges = edge_index.shape[1]
    edge_type = (jnp.arange(num_edges, dtype=jnp.int32) % 3) + 1  # ints as weights

    params = init_params(k_p)

    out = graphconv_model_forward(x, edge_index, edge_type, batch, params,
                                  num_graphs)
    out = jax.block_until_ready(out)
    assert out.shape == (num_graphs, OUTPUT_DIM)

    # Tight check against a reference with the same mixed-precision policy.
    ref_mixed = reference_forward_mixed(x, edge_index, edge_type, batch,
                                        params, num_graphs)
    assert jnp.allclose(out, ref_mixed, atol=1e-3, rtol=1e-3), (out, ref_mixed)

    # Sanity check against the exact f32 PyTorch semantics (bf16 MXU operands
    # introduce ~0.1-1% error): relative Frobenius error must stay small.
    ref_f32 = reference_forward_f32(x, edge_index, edge_type, batch, params,
                                    num_graphs)
    rel_err = (jnp.linalg.norm(out - ref_f32)
               / jnp.maximum(jnp.linalg.norm(ref_f32), 1e-6))
    assert rel_err < 2e-2, (rel_err, out, ref_f32)

    print("KERNEL_OK")
</pallas_src>

<mosaic_0001>
module attributes {stable_mosaic.version = 11 : i64} {
  func.func @_graphconv_model_kernel(%arg0: memref<16x16xbf16, #tpu.memory_space<vmem>>, %arg1: memref<8x16xbf16, #tpu.memory_space<vmem>>, %arg2: memref<16x8xbf16, #tpu.memory_space<vmem>>, %arg3: memref<8x128xbf16, #tpu.memory_space<vmem>>, %arg4: memref<8x128xbf16, #tpu.memory_space<vmem>>, %arg5: memref<1x128xf32, #tpu.memory_space<vmem>>, %arg6: memref<256x128xbf16, #tpu.memory_space<vmem>>, %arg7: memref<1x128xf32, #tpu.memory_space<vmem>>, %arg8: memref<128x128xbf16, #tpu.memory_space<vmem>>, %arg9: memref<1x128xf32, #tpu.memory_space<vmem>>, %arg10: memref<8x128xf32, #tpu.memory_space<vmem>>) attributes {dimension_semantics = [], scalar_prefetch = 0 : i64, scratch_operands = 0 : i64, tpu.core_type = #tpu.core_type<tc>} {
    %c0 = arith.constant 0 : index
    %c0_0 = arith.constant 0 : index
    %0 = vector.load %arg0[%c0, %c0_0] : memref<16x16xbf16, #tpu.memory_space<vmem>>, vector<16x16xbf16>
    %c0_1 = arith.constant 0 : index
    %c0_2 = arith.constant 0 : index
    %1 = vector.load %arg2[%c0_1, %c0_2] : memref<16x8xbf16, #tpu.memory_space<vmem>>, vector<16x8xbf16>
    %cst = arith.constant dense<0.000000e+00> : vector<16x8xf32>
    %2 = tpu.matmul %0, %1, %cst {dimension_numbers = #tpu.dot_dimension_numbers<[1], [0], [0], [1], [0, 0, 1, 1], [], []>} : vector<16x16xbf16>, vector<16x8xbf16>, vector<16x8xf32> -> vector<16x8xf32>
    %3 = arith.truncf %2 : vector<16x8xf32> to vector<16x8xbf16>
    %c0_3 = arith.constant 0 : index
    %c0_4 = arith.constant 0 : index
    %4 = vector.load %arg3[%c0_3, %c0_4] : memref<8x128xbf16, #tpu.memory_space<vmem>>, vector<8x128xbf16>
    %cst_5 = arith.constant dense<0.000000e+00> : vector<16x128xf32>
    %5 = tpu.matmul %3, %4, %cst_5 {dimension_numbers = #tpu.dot_dimension_numbers<[1], [0], [0], [1], [0, 0, 1, 1], [], []>} : vector<16x8xbf16>, vector<8x128xbf16>, vector<16x128xf32> -> vector<16x128xf32>
    %c0_6 = arith.constant 0 : index
    %c0_7 = arith.constant 0 : index
    %6 = vector.load %arg4[%c0_6, %c0_7] : memref<8x128xbf16, #tpu.memory_space<vmem>>, vector<8x128xbf16>
    %cst_8 = arith.constant dense<0.000000e+00> : vector<16x128xf32>
    %7 = tpu.matmul %1, %6, %cst_8 {dimension_numbers = #tpu.dot_dimension_numbers<[1], [0], [0], [1], [0, 0, 1, 1], [], []>} : vector<16x8xbf16>, vector<8x128xbf16>, vector<16x128xf32> -> vector<16x128xf32>
    %8 = arith.addf %5, %7 : vector<16x128xf32>
    %c0_9 = arith.constant 0 : index
    %c0_10 = arith.constant 0 : index
    %9 = vector.load %arg5[%c0_9, %c0_10] : memref<1x128xf32, #tpu.memory_space<vmem>>, vector<1x128xf32>
    %10 = vector.broadcast %9 : vector<1x128xf32> to vector<16x128xf32>
    %11 = arith.addf %8, %10 : vector<16x128xf32>
    %cst_11 = arith.constant 0.000000e+00 : f32
    %12 = vector.broadcast %cst_11 : f32 to vector<16x128xf32>
    %13 = arith.maximumf %11, %12 : vector<16x128xf32>
    %14 = arith.truncf %13 : vector<16x128xf32> to vector<16x128xbf16>
    %cst_12 = arith.constant dense<0.000000e+00> : vector<16x128xf32>
    %15 = tpu.matmul %0, %14, %cst_12 {dimension_numbers = #tpu.dot_dimension_numbers<[1], [0], [0], [1], [0, 0, 1, 1], [], []>} : vector<16x16xbf16>, vector<16x128xbf16>, vector<16x128xf32> -> vector<16x128xf32>
    %16 = arith.truncf %15 : vector<16x128xf32> to vector<16x128xbf16>
    %17 = tpu.concatenate %16, %14 in 1 : vector<16x128xbf16>, vector<16x128xbf16> -> vector<16x256xbf16>
    %c0_13 = arith.constant 0 : index
    %c0_14 = arith.constant 0 : index
    %18 = vector.load %arg6[%c0_13, %c0_14] : memref<256x128xbf16, #tpu.memory_space<vmem>>, vector<256x128xbf16>
    %cst_15 = arith.constant dense<0.000000e+00> : vector<16x128xf32>
    %19 = tpu.matmul %17, %18, %cst_15 {dimension_numbers = #tpu.dot_dimension_numbers<[1], [0], [0], [1], [0, 0, 1, 1], [], []>} : vector<16x256xbf16>, vector<256x128xbf16>, vector<16x128xf32> -> vector<16x128xf32>
    %c0_16 = arith.constant 0 : index
    %c0_17 = arith.constant 0 : index
    %20 = vector.load %arg7[%c0_16, %c0_17] : memref<1x128xf32, #tpu.memory_space<vmem>>, vector<1x128xf32>
    %21 = vector.broadcast %20 : vector<1x128xf32> to vector<16x128xf32>
    %22 = arith.addf %19, %21 : vector<16x128xf32>
    %cst_18 = arith.constant 0.000000e+00 : f32
    %23 = vector.broadcast %cst_18 : f32 to vector<16x128xf32>
    %24 = arith.maximumf %22, %23 : vector<16x128xf32>
    %c0_19 = arith.constant 0 : index
    %c0_20 = arith.constant 0 : index
    %25 = vector.load %arg1[%c0_19, %c0_20] : memref<8x16xbf16, #tpu.memory_space<vmem>>, vector<8x16xbf16>
    %26 = arith.truncf %24 : vector<16x128xf32> to vector<16x128xbf16>
    %cst_21 = arith.constant dense<0.000000e+00> : vector<8x128xf32>
    %27 = tpu.matmul %25, %26, %cst_21 {dimension_numbers = #tpu.dot_dimension_numbers<[1], [0], [0], [1], [0, 0, 1, 1], [], []>} : vector<8x16xbf16>, vector<16x128xbf16>, vector<8x128xf32> -> vector<8x128xf32>
    %28 = arith.truncf %27 : vector<8x128xf32> to vector<8x128xbf16>
    %c0_22 = arith.constant 0 : index
    %c0_23 = arith.constant 0 : index
    %29 = vector.load %arg8[%c0_22, %c0_23] : memref<128x128xbf16, #tpu.memory_space<vmem>>, vector<128x128xbf16>
    %cst_24 = arith.constant dense<0.000000e+00> : vector<8x128xf32>
    %30 = tpu.matmul %28, %29, %cst_24 {dimension_numbers = #tpu.dot_dimension_numbers<[1], [0], [0], [1], [0, 0, 1, 1], [], []>} : vector<8x128xbf16>, vector<128x128xbf16>, vector<8x128xf32> -> vector<8x128xf32>
    %c0_25 = arith.constant 0 : index
    %c0_26 = arith.constant 0 : index
    %31 = vector.load %arg9[%c0_25, %c0_26] : memref<1x128xf32, #tpu.memory_space<vmem>>, vector<1x128xf32>
    %32 = vector.broadcast %31 : vector<1x128xf32> to vector<8x128xf32>
    %33 = arith.addf %30, %32 : vector<8x128xf32>
    %c0_27 = arith.constant 0 : index
    %c0_28 = arith.constant 0 : index
    %34 = vector.load %arg10[%c0_27, %c0_28] : memref<8x128xf32, #tpu.memory_space<vmem>>, vector<8x128xf32>
    tpu.vector_store %arg10[%c0_27, %c0_28], %33 {strides = array<i32>} : memref<8x128xf32, #tpu.memory_space<vmem>>, vector<8x128xf32>,
    return
  }
}

</mosaic_0001>

<llo_original>
// kernel: tpu_custom_call.1
$region0: #{tpu_custom_call.1}
  #allocation0 [shape = 'u32[]', space=smem, size = 0x4, offset = 0x4, fixed_abs, tag = 'smem constant byte address 0x4 - core index']
  #allocation1 [shape = 'u32[144,128]{1,0:T(1,128)}', space=vmem, size = 0x12000, scoped, tag = 'internal scratch']
  %s0 = inlined_call_operand.vmem [shape: bf16[16,16], index: 0, kind: input, shape index: {}]
  %s1 = inlined_call_operand.vmem [shape: bf16[8,16], index: 1, kind: input, shape index: {}]
  %s2 = inlined_call_operand.vmem [shape: bf16[16,8], index: 2, kind: input, shape index: {}]
  %s3 = inlined_call_operand.vmem [shape: bf16[8,128], index: 3, kind: input, shape index: {}]
  %s4 = inlined_call_operand.hbm [shape: bf16[8,128], index: 4, kind: input, shape index: {}]
  %s5 = inlined_call_operand.vmem [shape: f32[1,128], index: 5, kind: input, shape index: {}]
  %s6 = inlined_call_operand.hbm [shape: bf16[256,128], index: 6, kind: input, shape index: {}]
  %s7 = inlined_call_operand.vmem [shape: f32[1,128], index: 7, kind: input, shape index: {}]
  %s8 = inlined_call_operand.hbm [shape: bf16[128,128], index: 8, kind: input, shape index: {}]
  %s9 = inlined_call_operand.vmem [shape: f32[1,128], index: 9, kind: input, shape index: {}]
  %s10 = inlined_call_operand.hbm [shape: f32[8,128], index: 10, kind: output, shape index: {}]
  %s11 = sld [smem:[#allocation0]]
  $region62: #{tpu_custom_call.1} parent=0
    _
  %s13 = ssub.s32 1, %s11
  %s14 = scalar_select 0, %s13, %s11
  $region1: #{tpu_custom_call.1} parent=0
    #allocation2 [shape = 'u8[2048]{0}', space=vmem, size = 0x800, scoped, tag = 'input window, operand 4, single buffered']
    #allocation3 [shape = 's32[1]{0}', space=sflag, size = 0x4, scoped, tag = 'scoped memory for tpu_custom_call.1']
    #allocation4 [shape = 's32[1]{0}', space=sflag, size = 0x4, scoped, tag = 'scoped memory for tpu_custom_call.1']
    #allocation5 [shape = 'u8[65536]{0}', space=vmem, size = 0x10000, scoped, tag = 'input window, operand 6, single buffered']
    #allocation6 [shape = 's32[1]{0}', space=sflag, size = 0x4, scoped, tag = 'scoped memory for tpu_custom_call.1']
    #allocation7 [shape = 'u8[32768]{0}', space=vmem, size = 0x8000, scoped, tag = 'input window, operand 8, single buffered']
    #allocation8 [shape = 'u8[4096]{0}', space=vmem, size = 0x1000, scoped, tag = 'output window, operand 0, single buffered']
    %15 = vsyncpa [#allocation3], 0
    %16 = vsyncpa [#allocation6], 0
    %17 = vsyncpa [#allocation4], 0
    // Predicated region
    $region2: #{tpu_custom_call.1} parent=1 // pred_check
      _
    $region3: #{tpu_custom_call.1} parent=1 // pred_check_branch
      %19 = sbr.rel (0) target = $region5
    $region4: #{tpu_custom_call.1} parent=1 // pred_region
      _
    $region5: #{tpu_custom_call.1} parent=1 // pred_fallthru
      _
    // Predicated region
    $region6: #{tpu_custom_call.1} parent=1 // pred_check
      _
    $region7: #{tpu_custom_call.1} parent=1 // pred_check_branch
      %21 = sbr.rel (0) target = $region9
    $region8: #{tpu_custom_call.1} parent=1 // pred_region
      _
    $region9: #{tpu_custom_call.1} parent=1 // pred_fallthru
      _
    // Predicated region
    $region10: #{tpu_custom_call.1} parent=1 // pred_check
      _
    $region11: #{tpu_custom_call.1} parent=1 // pred_check_branch
      %23 = sbr.rel (0) target = $region13
    $region12: #{tpu_custom_call.1} parent=1 // pred_region
      _
    $region13: #{tpu_custom_call.1} parent=1 // pred_fallthru
      _
    // Predicated region
    $region14: #{tpu_custom_call.1} parent=1 // pred_check
      _
    $region15: #{tpu_custom_call.1} parent=1 // pred_check_branch
      %25 = sbr.rel (0) target = $region17
    $region16: #{tpu_custom_call.1} parent=1 // pred_region
      _
    $region17: #{tpu_custom_call.1} parent=1 // pred_fallthru
      _
    // Predicated region
    $region18: #{tpu_custom_call.1} parent=1 // pred_check
      _
    $region19: #{tpu_custom_call.1} parent=1 // pred_check_branch
      %27 = sbr.rel (0) target = $region21
    $region20: #{tpu_custom_call.1} parent=1 // pred_region
      %s29 = ssub.s32 64, 64
      %30 = vsyncadd [#allocation3], %s29
      %s32 = sshll.u32 [#allocation2], 4
      %s33 = int_to_ptr.vmem [resolvable:$true] %s32
      %35 = dma.hbm_to_vmem [thread:$0]  %s4, 64, %s33, [#allocation3]
    $region21: #{tpu_custom_call.1} parent=1 // pred_fallthru
      _
    // Predicated region
    $region22: #{tpu_custom_call.1} parent=1 // pred_check
      _
    $region23: #{tpu_custom_call.1} parent=1 // pred_check_branch
      %37 = sbr.rel (0) target = $region25
    $region24: #{tpu_custom_call.1} parent=1 // pred_region
      _
    $region25: #{tpu_custom_call.1} parent=1 // pred_fallthru
      _
    // Predicated region
    $region26: #{tpu_custom_call.1} parent=1 // pred_check
      _
    $region27: #{tpu_custom_call.1} parent=1 // pred_check_branch
      %39 = sbr.rel (0) target = $region29
    $region28: #{tpu_custom_call.1} parent=1 // pred_region
      %s41 = ssub.s32 2048, 2048
      %42 = vsyncadd [#allocation6], %s41
      %s43 = sshll.u32 [#allocation5], 4
      %s44 = int_to_ptr.vmem [resolvable:$true] %s43
      %49 = dma.hbm_to_vmem [thread:$0]  %s6, 2048, %s44, [#allocation6], 64, 64, 4
    $region29: #{tpu_custom_call.1} parent=1 // pred_fallthru
      _
    // Predicated region
    $region30: #{tpu_custom_call.1} parent=1 // pred_check
      _
    $region31: #{tpu_custom_call.1} parent=1 // pred_check_branch
      %51 = sbr.rel (0) target = $region33
    $region32: #{tpu_custom_call.1} parent=1 // pred_region
      _
    $region33: #{tpu_custom_call.1} parent=1 // pred_fallthru
      _
    // Predicated region
    $region34: #{tpu_custom_call.1} parent=1 // pred_check
      _
    $region35: #{tpu_custom_call.1} parent=1 // pred_check_branch
      %53 = sbr.rel (0) target = $region37
    $region36: #{tpu_custom_call.1} parent=1 // pred_region
      %s55 = ssub.s32 1024, 1024
      %56 = vsyncadd [#allocation6], %s55
      %s57 = sshll.u32 [#allocation7], 4
      %s58 = int_to_ptr.vmem [resolvable:$true] %s57
      %63 = dma.hbm_to_vmem [thread:$0]  %s8, 1024, %s58, [#allocation6], 64, 64, 4
    $region37: #{tpu_custom_call.1} parent=1 // pred_fallthru
      _
    // Predicated region
    $region38: #{tpu_custom_call.1} parent=1 // pred_check
      _
    $region39: #{tpu_custom_call.1} parent=1 // pred_check_branch
      %65 = sbr.rel (0) target = $region41
    $region40: #{tpu_custom_call.1} parent=1 // pred_region
      _
    $region41: #{tpu_custom_call.1} parent=1 // pred_fallthru
      _
    // Predicated region
    $region42: #{tpu_custom_call.1} parent=1 // pred_check
      _
    $region43: #{tpu_custom_call.1} parent=1 // pred_check_branch
      %67 = sbr.rel (0) target = $region45
    $region44: #{tpu_custom_call.1} parent=1 // pred_region
      %68 = dma.done [#allocation3], 64
    $region45: #{tpu_custom_call.1} parent=1 // pred_fallthru
      _
    // Predicated region
    $region46: #{tpu_custom_call.1} parent=1 // pred_check
      _
    $region47: #{tpu_custom_call.1} parent=1 // pred_check_branch
      %70 = sbr.rel (0) target = $region49
    $region48: #{tpu_custom_call.1} parent=1 // pred_region
      %71 = dma.done [#allocation6], 2048
    $region49: #{tpu_custom_call.1} parent=1 // pred_fallthru
      _
    // Predicated region
    $region50: #{tpu_custom_call.1} parent=1 // pred_check
      _
    $region51: #{tpu_custom_call.1} parent=1 // pred_check_branch
      %73 = sbr.rel (0) target = $region53
    $region52: #{tpu_custom_call.1} parent=1 // pred_region
      %74 = dma.done [#allocation6], 1024
    $region53: #{tpu_custom_call.1} parent=1 // pred_fallthru
      _
    %v76 = vld [vmem:[%s0] sm:$0xf]
    %v77 = vld [vmem:[%s0 + $0x4] sm:$0xf]
    %v78 = vld [vmem:[%s2] sm:$0xf]
    %v79 = vld [vmem:[%s2 + $0x4] sm:$0xf]
    %v82 = vunpack.c.l.b16 %v76
    %v83 = vunpack.c.l.b16 %v77
    %v84 = vpack.c.b16 %v83, %v82
    %v87 = vunpack.c.l.b16 %v78
    %v88 = vunpack.c.l.b16 %v79
    %v89 = vpack.c.b16 %v88, %v87
    %vm91 = vcmask 130048
    %v93 = vsel %vm91, %v84, 0
    %95 = vmatprep.subr.bf16.mxu0 0
    %96 = vmatpush1.bf16.msra.mxu0 0
    %97 = vmatprep.subr.bf16.mxu0 0
    %98 = vmatpush1.bf16.msra.mxu0 0
    %99 = vmatprep.subr.bf16.mxu0 0
    %100 = vmatpush1.bf16.msra.mxu0 0
    %101 = vmatprep.subr.bf16.mxu0 0
    %102 = vmatpush1.bf16.msra.mxu0 0
    %103 = vmatprep.subr.bf16.mxu0 0
    %104 = vmatpush1.bf16.msra.mxu0 0
    %105 = vmatprep.subr.bf16.mxu0 0
    %106 = vmatpush1.bf16.msra.mxu0 0
    %107 = vmatprep.subr.bf16.mxu0 0
    %108 = vmatpush1.bf16.msra.mxu0 0
    %109 = vmatprep.subr.bf16.mxu0 0
    %110 = vmatpush1.bf16.msra.mxu0 %v89
    %111 = vmatprep.subr.bf16.mxu0 0
    %112 = vmatpush2.bf16.msra.mxu0 0
    %113 = vmatprep.subr.bf16.mxu0 0
    %114 = vmatpush2.bf16.msra.mxu0 0
    %115 = vmatprep.subr.bf16.mxu0 0
    %116 = vmatpush2.bf16.msra.mxu0 0
    %117 = vmatprep.subr.bf16.mxu0 0
    %118 = vmatpush2.bf16.msra.mxu0 0
    %119 = vmatprep.subr.bf16.mxu0 0
    %120 = vmatpush2.bf16.msra.mxu0 0
    %121 = vmatprep.subr.bf16.mxu0 0
    %122 = vmatpush2.bf16.msra.mxu0 0
    %123 = vmatprep.subr.bf16.mxu0 0
    %124 = vmatpush2.bf16.msra.mxu0 0
    %125 = vmatprep.subr.bf16.mxu0 0
    %126 = vmatpush2.bf16.msra.mxu0 0
    %127 = vmatprep.mubr.bf16.mxu0 0
    %128 = vmatmul.mubr.bf16.gmra.mxu0 %v93
    %v129 = vpop.f32.mrf.mxu0
    %v130 = vadd.f32 0.0, %v129
    %v131 = vpop.f32.mrf.mxu0
    %v132 = vpop.f32.mrf.mxu0
    %v133 = vadd.f32 0.0, %v132
    %v134 = vpop.f32.mrf.mxu0
    %135 = vdwg.mxu0
    %v136 = vpack.c.bf16 %v133, %v130
    %v137 = vld [vmem:[%s3] sm:$0xf]
    %v138 = vld [vmem:[#allocation2] sm:$0xf]
    %vm139 = vcmask 64512
    %v141 = vsel %vm139, %v89, 0
    %vm143 = vcmask 1043456
    %v145 = vsel %vm143, %v138, 0
    %147 = vmatprep.subr.bf16.mxu0 0
    %148 = vmatpush1.bf16.msra.mxu0 0
    %149 = vmatprep.subr.bf16.mxu0 0
    %150 = vmatpush1.bf16.msra.mxu0 0
    %151 = vmatprep.subr.bf16.mxu0 0
    %152 = vmatpush1.bf16.msra.mxu0 0
    %153 = vmatprep.subr.bf16.mxu0 0
    %154 = vmatpush1.bf16.msra.mxu0 0
    %155 = vmatprep.subr.bf16.mxu0 0
    %156 = vmatpush1.bf16.msra.mxu0 0
    %157 = vmatprep.subr.bf16.mxu0 0
    %158 = vmatpush1.bf16.msra.mxu0 0
    %159 = vmatprep.subr.bf16.mxu0 0
    %160 = vmatpush1.bf16.msra.mxu0 0
    %161 = vmatprep.subr.bf16.mxu0 0
    %162 = vmatpush1.bf16.msra.mxu0 %v145
    %163 = vmatprep.subr.bf16.mxu0 0
    %164 = vmatpush2.bf16.msra.mxu0 0
    %165 = vmatprep.subr.bf16.mxu0 0
    %166 = vmatpush2.bf16.msra.mxu0 0
    %167 = vmatprep.subr.bf16.mxu0 0
    %168 = vmatpush2.bf16.msra.mxu0 0
    %169 = vmatprep.subr.bf16.mxu0 0
    %170 = vmatpush2.bf16.msra.mxu0 0
    %171 = vmatprep.subr.bf16.mxu0 0
    %172 = vmatpush2.bf16.msra.mxu0 0
    %173 = vmatprep.subr.bf16.mxu0 0
    %174 = vmatpush2.bf16.msra.mxu0 0
    %175 = vmatprep.subr.bf16.mxu0 0
    %176 = vmatpush2.bf16.msra.mxu0 0
    %177 = vmatprep.subr.bf16.mxu0 0
    %178 = vmatpush2.bf16.msra.mxu0 0
    %179 = vmatprep.mubr.bf16.mxu0 0
    %180 = vmatmul.mubr.bf16.gmra.mxu0 %v141
    %v181 = vpop.f32.mrf.mxu0
    %v182 = vadd.f32 0.0, %v181
    %v183 = vpop.f32.mrf.mxu0
    %v184 = vpop.f32.mrf.mxu0
    %v185 = vadd.f32 0.0, %v184
    %v186 = vpop.f32.mrf.mxu0
    %187 = vdwg.mxu0
    %v189 = vsel %vm139, %v136, 0
    %v192 = vsel %vm143, %v137, 0
    %194 = vmatprep.subr.bf16.mxu0 0
    %195 = vmatpush1.bf16.msra.mxu0 0
    %196 = vmatprep.subr.bf16.mxu0 0
    %197 = vmatpush1.bf16.msra.mxu0 0
    %198 = vmatprep.subr.bf16.mxu0 0
    %199 = vmatpush1.bf16.msra.mxu0 0
    %200 = vmatprep.subr.bf16.mxu0 0
    %201 = vmatpush1.bf16.msra.mxu0 0
    %202 = vmatprep.subr.bf16.mxu0 0
    %203 = vmatpush1.bf16.msra.mxu0 0
    %204 = vmatprep.subr.bf16.mxu0 0
    %205 = vmatpush1.bf16.msra.mxu0 0
    %206 = vmatprep.subr.bf16.mxu0 0
    %207 = vmatpush1.bf16.msra.mxu0 0
    %208 = vmatprep.subr.bf16.mxu0 0
    %209 = vmatpush1.bf16.msra.mxu0 %v192
    %210 = vmatprep.subr.bf16.mxu0 0
    %211 = vmatpush2.bf16.msra.mxu0 0
    %212 = vmatprep.subr.bf16.mxu0 0
    %213 = vmatpush2.bf16.msra.mxu0 0
    %214 = vmatprep.subr.bf16.mxu0 0
    %215 = vmatpush2.bf16.msra.mxu0 0
    %216 = vmatprep.subr.bf16.mxu0 0
    %217 = vmatpush2.bf16.msra.mxu0 0
    %218 = vmatprep.subr.bf16.mxu0 0
    %219 = vmatpush2.bf16.msra.mxu0 0
    %220 = vmatprep.subr.bf16.mxu0 0
    %221 = vmatpush2.bf16.msra.mxu0 0
    %222 = vmatprep.subr.bf16.mxu0 0
    %223 = vmatpush2.bf16.msra.mxu0 0
    %224 = vmatprep.subr.bf16.mxu0 0
    %225 = vmatpush2.bf16.msra.mxu0 0
    %226 = vmatprep.mubr.bf16.mxu0 0
    %227 = vmatmul.mubr.bf16.gmra.mxu0 %v189
    %v228 = vpop.f32.mrf.mxu0
    %v229 = vadd.f32 %v182, %v228
    %v230 = vpop.f32.mrf.mxu0
    %v231 = vpop.f32.mrf.mxu0
    %v232 = vadd.f32 %v185, %v231
    %v233 = vpop.f32.mrf.mxu0
    %234 = vdwg.mxu0
    %v235 = vld [vmem:[%s5] sm:$0x1]
    %v237 = vlaneseq
    %v238 = vshrl.u32 %v237, 7
    %v239 = vsub.s32 0, %v238
    %v240 = vrot.slane %v235, %v239
    %v242 = vadd.f32 %v229, %v240
    %v243 = vadd.f32 %v232, %v240
    %v244 = vmax.f32 %v242, 0.0
    %v245 = vmax.f32 %v243, 0.0
    %v246 = vpack.c.bf16 %v245, %v244
    %247 = vmatprep.subr.bf16.mxu0 0
    %248 = vmatpush1.bf16.msra.mxu0 0
    %249 = vmatprep.subr.bf16.mxu0 0
    %250 = vmatpush1.bf16.msra.mxu0 0
    %251 = vmatprep.subr.bf16.mxu0 0
    %252 = vmatpush1.bf16.msra.mxu0 0
    %253 = vmatprep.subr.bf16.mxu0 0
    %254 = vmatpush1.bf16.msra.mxu0 0
    %255 = vmatprep.subr.bf16.mxu0 0
    %256 = vmatpush1.bf16.msra.mxu0 0
    %257 = vmatprep.subr.bf16.mxu0 0
    %258 = vmatpush1.bf16.msra.mxu0 0
    %259 = vmatprep.subr.bf16.mxu0 0
    %260 = vmatpush1.bf16.msra.mxu0 0
    %261 = vmatprep.subr.bf16.mxu0 0
    %262 = vmatpush1.bf16.msra.mxu0 %v246
    %263 = vmatprep.subr.bf16.mxu0 0
    %264 = vmatpush2.bf16.msra.mxu0 0
    %265 = vmatprep.subr.bf16.mxu0 0
    %266 = vmatpush2.bf16.msra.mxu0 0
    %267 = vmatprep.subr.bf16.mxu0 0
    %268 = vmatpush2.bf16.msra.mxu0 0
    %269 = vmatprep.subr.bf16.mxu0 0
    %270 = vmatpush2.bf16.msra.mxu0 0
    %271 = vmatprep.subr.bf16.mxu0 0
    %272 = vmatpush2.bf16.msra.mxu0 0
    %273 = vmatprep.subr.bf16.mxu0 0
    %274 = vmatpush2.bf16.msra.mxu0 0
    %275 = vmatprep.subr.bf16.mxu0 0
    %276 = vmatpush2.bf16.msra.mxu0 0
    %277 = vmatprep.subr.bf16.mxu0 0
    %278 = vmatpush2.bf16.msra.mxu0 0
    %279 = vmatprep.mubr.bf16.mxu0 0
    %280 = vmatmul.mubr.bf16.gmra.mxu0 %v93
    %v281 = vpop.f32.mrf.mxu0
    %v282 = vadd.f32 0.0, %v281
    %v283 = vpop.f32.mrf.mxu0
    %v284 = vpop.f32.mrf.mxu0
    %v285 = vadd.f32 0.0, %v284
    %v286 = vpop.f32.mrf.mxu0
    %287 = vdwg.mxu0
    %v288 = vpack.c.bf16 %v285, %v282
    %v289 = vld [vmem:[#allocation5] sm:$0xf]
    %v290 = vld [vmem:[#allocation5 + $0x4] sm:$0xf]
    %v291 = vld [vmem:[#allocation5 + $0x8] sm:$0xf]
    %v292 = vld [vmem:[#allocation5 + $0xc] sm:$0xf]
    %v293 = vld [vmem:[#allocation5 + $0x10] sm:$0xf]
    %v294 = vld [vmem:[#allocation5 + $0x14] sm:$0xf]
    %v295 = vld [vmem:[#allocation5 + $0x18] sm:$0xf]
    %v296 = vld [vmem:[#allocation5 + $0x1c] sm:$0xf]
    %v297 = vld [vmem:[#allocation5 + $0x20] sm:$0xf]
    %v298 = vld [vmem:[#allocation5 + $0x24] sm:$0xf]
    %v299 = vld [vmem:[#allocation5 + $0x28] sm:$0xf]
    %v300 = vld [vmem:[#allocation5 + $0x2c] sm:$0xf]
    %v301 = vld [vmem:[#allocation5 + $0x30] sm:$0xf]
    %v302 = vld [vmem:[#allocation5 + $0x34] sm:$0xf]
    %v303 = vld [vmem:[#allocation5 + $0x38] sm:$0xf]
    %v304 = vld [vmem:[#allocation5 + $0x3c] sm:$0xf]
    %v305 = vld [vmem:[#allocation5 + $0x40] sm:$0xf]
    %v306 = vld [vmem:[#allocation5 + $0x44] sm:$0xf]
    %v307 = vld [vmem:[#allocation5 + $0x48] sm:$0xf]
    %v308 = vld [vmem:[#allocation5 + $0x4c] sm:$0xf]
    %v309 = vld [vmem:[#allocation5 + $0x50] sm:$0xf]
    %v310 = vld [vmem:[#allocation5 + $0x54] sm:$0xf]
    %v311 = vld [vmem:[#allocation5 + $0x58] sm:$0xf]
    %v312 = vld [vmem:[#allocation5 + $0x5c] sm:$0xf]
    %v313 = vld [vmem:[#allocation5 + $0x60] sm:$0xf]
    %v314 = vld [vmem:[#allocation5 + $0x64] sm:$0xf]
    %v315 = vld [vmem:[#allocation5 + $0x68] sm:$0xf]
    %v316 = vld [vmem:[#allocation5 + $0x6c] sm:$0xf]
    %v317 = vld [vmem:[#allocation5 + $0x70] sm:$0xf]
    %v318 = vld [vmem:[#allocation5 + $0x74] sm:$0xf]
    %v319 = vld [vmem:[#allocation5 + $0x78] sm:$0xf]
    %v320 = vld [vmem:[#allocation5 + $0x7c] sm:$0xf]
    %v321 = vld [vmem:[%s7] sm:$0x1]
    %v323 = vlaneseq
    %v324 = vshrl.u32 %v323, 7
    %v325 = vsub.s32 0, %v324
    %v326 = vrot.slane %v321, %v325
    %v360 = vunpack.c.l.b16 %v289
    %v361 = vunpack.c.l.b16 %v290
    %v362 = vunpack.c.l.b16 %v291
    %v363 = vunpack.c.l.b16 %v292
    %v364 = vunpack.c.l.b16 %v293
    %v365 = vunpack.c.l.b16 %v294
    %v366 = vunpack.c.l.b16 %v295
    %v367 = vunpack.c.l.b16 %v296
    %v368 = vunpack.c.l.b16 %v297
    %v369 = vunpack.c.l.b16 %v298
    %v370 = vunpack.c.l.b16 %v299
    %v371 = vunpack.c.l.b16 %v300
    %v372 = vunpack.c.l.b16 %v301
    %v373 = vunpack.c.l.b16 %v302
    %v374 = vunpack.c.l.b16 %v303
    %v375 = vunpack.c.l.b16 %v304
    %v376 = vunpack.c.l.b16 %v305
    %v377 = vunpack.c.l.b16 %v306
    %v378 = vunpack.c.l.b16 %v307
    %v379 = vunpack.c.l.b16 %v308
    %v380 = vunpack.c.l.b16 %v309
    %v381 = vunpack.c.l.b16 %v310
    %v382 = vunpack.c.l.b16 %v311
    %v383 = vunpack.c.l.b16 %v312
    %v384 = vunpack.c.l.b16 %v313
    %v385 = vunpack.c.l.b16 %v314
    %v386 = vunpack.c.l.b16 %v315
    %v387 = vunpack.c.l.b16 %v316
    %v388 = vunpack.c.l.b16 %v317
    %v389 = vunpack.c.l.b16 %v318
    %v390 = vunpack.c.l.b16 %v319
    %v391 = vunpack.c.l.b16 %v320
    %v392 = vpack.c.b16 %v361, %v360
    %v393 = vpack.c.b16 %v363, %v362
    %v394 = vpack.c.b16 %v365, %v364
    %v395 = vpack.c.b16 %v367, %v366
    %v396 = vpack.c.b16 %v369, %v368
    %v397 = vpack.c.b16 %v371, %v370
    %v398 = vpack.c.b16 %v373, %v372
    %v399 = vpack.c.b16 %v375, %v374
    %v400 = vpack.c.b16 %v377, %v376
    %v401 = vpack.c.b16 %v379, %v378
    %v402 = vpack.c.b16 %v381, %v380
    %v403 = vpack.c.b16 %v383, %v382
    %v404 = vpack.c.b16 %v385, %v384
    %v405 = vpack.c.b16 %v387, %v386
    %v406 = vpack.c.b16 %v389, %v388
    %v407 = vpack.c.b16 %v391, %v390
    %424 = vmatprep.subr.bf16.mxu0 0
    %425 = vmatpush1.bf16.msra.mxu0 %v399
    %426 = vmatprep.subr.bf16.mxu0 0
    %427 = vmatpush1.bf16.msra.mxu0 %v398
    %428 = vmatprep.subr.bf16.mxu0 0
    %429 = vmatpush1.bf16.msra.mxu0 %v397
    %430 = vmatprep.subr.bf16.mxu0 0
    %431 = vmatpush1.bf16.msra.mxu0 %v396
    %432 = vmatprep.subr.bf16.mxu0 0
    %433 = vmatpush1.bf16.msra.mxu0 %v395
    %434 = vmatprep.subr.bf16.mxu0 0
    %435 = vmatpush1.bf16.msra.mxu0 %v394
    %436 = vmatprep.subr.bf16.mxu0 0
    %437 = vmatpush1.bf16.msra.mxu0 %v393
    %438 = vmatprep.subr.bf16.mxu0 0
    %439 = vmatpush1.bf16.msra.mxu0 %v392
    %440 = vmatprep.subr.bf16.mxu0 0
    %441 = vmatpush2.bf16.msra.mxu0 %v407
    %442 = vmatprep.subr.bf16.mxu0 0
    %443 = vmatpush2.bf16.msra.mxu0 %v406
    %444 = vmatprep.subr.bf16.mxu0 0
    %445 = vmatpush2.bf16.msra.mxu0 %v405
    %446 = vmatprep.subr.bf16.mxu0 0
    %447 = vmatpush2.bf16.msra.mxu0 %v404
    %448 = vmatprep.subr.bf16.mxu0 0
    %449 = vmatpush2.bf16.msra.mxu0 %v403
    %450 = vmatprep.subr.bf16.mxu0 0
    %451 = vmatpush2.bf16.msra.mxu0 %v402
    %452 = vmatprep.subr.bf16.mxu0 0
    %453 = vmatpush2.bf16.msra.mxu0 %v401
    %454 = vmatprep.subr.bf16.mxu0 0
    %455 = vmatpush2.bf16.msra.mxu0 %v400
    %456 = vmatprep.mubr.bf16.mxu0 %v246
    %457 = vmatmul.mubr.bf16.gmra.mxu0 %v288
    %v458 = vpop.f32.mrf.mxu0
    %v459 = vadd.f32 %v326, %v458
    %v460 = vpop.f32.mrf.mxu0
    %v461 = vpop.f32.mrf.mxu0
    %v462 = vadd.f32 %v326, %v461
    %v463 = vpop.f32.mrf.mxu0
    %464 = vdwg.mxu0
    %v465 = vmax.f32 %v459, 0.0
    %v466 = vmax.f32 %v462, 0.0
    %v467 = vld [vmem:[%s1] sm:$0xf]
    %v468 = vpack.c.bf16 %v466, %v465
    %v470 = vsel %vm91, %v467, 0
    %472 = vmatprep.subr.bf16.mxu0 0
    %473 = vmatpush1.bf16.msra.mxu0 0
    %474 = vmatprep.subr.bf16.mxu0 0
    %475 = vmatpush1.bf16.msra.mxu0 0
    %476 = vmatprep.subr.bf16.mxu0 0
    %477 = vmatpush1.bf16.msra.mxu0 0
    %478 = vmatprep.subr.bf16.mxu0 0
    %479 = vmatpush1.bf16.msra.mxu0 0
    %480 = vmatprep.subr.bf16.mxu0 0
    %481 = vmatpush1.bf16.msra.mxu0 0
    %482 = vmatprep.subr.bf16.mxu0 0
    %483 = vmatpush1.bf16.msra.mxu0 0
    %484 = vmatprep.subr.bf16.mxu0 0
    %485 = vmatpush1.bf16.msra.mxu0 0
    %486 = vmatprep.subr.bf16.mxu0 0
    %487 = vmatpush1.bf16.msra.mxu0 %v468
    %488 = vmatprep.subr.bf16.mxu0 0
    %489 = vmatpush2.bf16.msra.mxu0 0
    %490 = vmatprep.subr.bf16.mxu0 0
    %491 = vmatpush2.bf16.msra.mxu0 0
    %492 = vmatprep.subr.bf16.mxu0 0
    %493 = vmatpush2.bf16.msra.mxu0 0
    %494 = vmatprep.subr.bf16.mxu0 0
    %495 = vmatpush2.bf16.msra.mxu0 0
    %496 = vmatprep.subr.bf16.mxu0 0
    %497 = vmatpush2.bf16.msra.mxu0 0
    %498 = vmatprep.subr.bf16.mxu0 0
    %499 = vmatpush2.bf16.msra.mxu0 0
    %500 = vmatprep.subr.bf16.mxu0 0
    %501 = vmatpush2.bf16.msra.mxu0 0
    %502 = vmatprep.subr.bf16.mxu0 0
    %503 = vmatpush2.bf16.msra.mxu0 0
    %504 = vmatprep.mubr.bf16.mxu0 0
    %505 = vmatmul.mubr.bf16.gmra.mxu0 %v470
    %v506 = vpop.f32.mrf.mxu0
    %v507 = vadd.f32 0.0, %v506
    %v508 = vpop.f32.mrf.mxu0
    %v509 = vpop.f32.mrf.mxu0
    %v510 = vpop.f32.mrf.mxu0
    %511 = vdwg.mxu0
    %v512 = vpack.c.bf16 %v507, %v507
    %v513 = vld [vmem:[#allocation7] sm:$0xf]
    %v514 = vld [vmem:[#allocation7 + $0x4] sm:$0xf]
    %v515 = vld [vmem:[#allocation7 + $0x8] sm:$0xf]
    %v516 = vld [vmem:[#allocation7 + $0xc] sm:$0xf]
    %v517 = vld [vmem:[#allocation7 + $0x10] sm:$0xf]
    %v518 = vld [vmem:[#allocation7 + $0x14] sm:$0xf]
    %v519 = vld [vmem:[#allocation7 + $0x18] sm:$0xf]
    %v520 = vld [vmem:[#allocation7 + $0x1c] sm:$0xf]
    %v521 = vld [vmem:[#allocation7 + $0x20] sm:$0xf]
    %v522 = vld [vmem:[#allocation7 + $0x24] sm:$0xf]
    %v523 = vld [vmem:[#allocation7 + $0x28] sm:$0xf]
    %v524 = vld [vmem:[#allocation7 + $0x2c] sm:$0xf]
    %v525 = vld [vmem:[#allocation7 + $0x30] sm:$0xf]
    %v526 = vld [vmem:[#allocation7 + $0x34] sm:$0xf]
    %v527 = vld [vmem:[#allocation7 + $0x38] sm:$0xf]
    %v528 = vld [vmem:[#allocation7 + $0x3c] sm:$0xf]
    %v529 = vld [vmem:[%s9] sm:$0x1]
    %v531 = vlaneseq
    %v532 = vshrl.u32 %v531, 7
    %v533 = vsub.s32 0, %v532
    %v534 = vrot.slane %v529, %v533
    %v552 = vunpack.c.l.b16 %v513
    %v553 = vunpack.c.l.b16 %v514
    %v554 = vunpack.c.l.b16 %v515
    %v555 = vunpack.c.l.b16 %v516
    %v556 = vunpack.c.l.b16 %v517
    %v557 = vunpack.c.l.b16 %v518
    %v558 = vunpack.c.l.b16 %v519
    %v559 = vunpack.c.l.b16 %v520
    %v560 = vunpack.c.l.b16 %v521
    %v561 = vunpack.c.l.b16 %v522
    %v562 = vunpack.c.l.b16 %v523
    %v563 = vunpack.c.l.b16 %v524
    %v564 = vunpack.c.l.b16 %v525
    %v565 = vunpack.c.l.b16 %v526
    %v566 = vunpack.c.l.b16 %v527
    %v567 = vunpack.c.l.b16 %v528
    %v568 = vpack.c.b16 %v553, %v552
    %v569 = vpack.c.b16 %v555, %v554
    %v570 = vpack.c.b16 %v557, %v556
    %v571 = vpack.c.b16 %v559, %v558
    %v572 = vpack.c.b16 %v561, %v560
    %v573 = vpack.c.b16 %v563, %v562
    %v574 = vpack.c.b16 %v565, %v564
    %v575 = vpack.c.b16 %v567, %v566
    %584 = vmatprep.subr.bf16.mxu0 0
    %585 = vmatpush1.bf16.msra.mxu0 %v575
    %586 = vmatprep.subr.bf16.mxu0 0
    %587 = vmatpush1.bf16.msra.mxu0 %v574
    %588 = vmatprep.subr.bf16.mxu0 0
    %589 = vmatpush1.bf16.msra.mxu0 %v573
    %590 = vmatprep.subr.bf16.mxu0 0
    %591 = vmatpush1.bf16.msra.mxu0 %v572
    %592 = vmatprep.subr.bf16.mxu0 0
    %593 = vmatpush1.bf16.msra.mxu0 %v571
    %594 = vmatprep.subr.bf16.mxu0 0
    %595 = vmatpush1.bf16.msra.mxu0 %v570
    %596 = vmatprep.subr.bf16.mxu0 0
    %597 = vmatpush1.bf16.msra.mxu0 %v569
    %598 = vmatprep.subr.bf16.mxu0 0
    %599 = vmatpush1.bf16.msra.mxu0 %v568
    %600 = vmatprep.subr.bf16.mxu0 0
    %601 = vmatpush2.bf16.msra.mxu0 0
    %602 = vmatprep.subr.bf16.mxu0 0
    %603 = vmatpush2.bf16.msra.mxu0 0
    %604 = vmatprep.subr.bf16.mxu0 0
    %605 = vmatpush2.bf16.msra.mxu0 0
    %606 = vmatprep.subr.bf16.mxu0 0
    %607 = vmatpush2.bf16.msra.mxu0 0
    %608 = vmatprep.subr.bf16.mxu0 0
    %609 = vmatpush2.bf16.msra.mxu0 0
    %610 = vmatprep.subr.bf16.mxu0 0
    %611 = vmatpush2.bf16.msra.mxu0 0
    %612 = vmatprep.subr.bf16.mxu0 0
    %613 = vmatpush2.bf16.msra.mxu0 0
    %614 = vmatprep.subr.bf16.mxu0 0
    %615 = vmatpush2.bf16.msra.mxu0 0
    %616 = vmatprep.mubr.bf16.mxu0 0
    %617 = vmatmul.mubr.bf16.gmra.mxu0 %v512
    %v618 = vpop.f32.mrf.mxu0
    %v619 = vadd.f32 %v534, %v618
    %v620 = vpop.f32.mrf.mxu0
    %v621 = vpop.f32.mrf.mxu0
    %v622 = vpop.f32.mrf.mxu0
    %623 = vdwg.mxu0
    %624 = vst [vmem:[#allocation8] sm:$0xff] %v619
    // Predicated region
    $region54: #{tpu_custom_call.1} parent=1 // pred_check
      _
    $region55: #{tpu_custom_call.1} parent=1 // pred_check_branch
      %626 = sbr.rel (0) target = $region57
    $region56: #{tpu_custom_call.1} parent=1 // pred_region
      %s628 = ssub.s32 128, 128
      %629 = vsyncadd [#allocation4], %s628
      %s631 = sshll.u32 [#allocation8], 4
      %s632 = int_to_ptr.vmem [resolvable:$true] %s631
      %634 = dma.vmem_to_hbm [thread:$0]  %s632, 128, %s10, [#allocation4]
    $region57: #{tpu_custom_call.1} parent=1 // pred_fallthru
      _
    // Predicated region
    $region58: #{tpu_custom_call.1} parent=1 // pred_check
      _
    $region59: #{tpu_custom_call.1} parent=1 // pred_check_branch
      %636 = sbr.rel (0) target = $region61
    $region60: #{tpu_custom_call.1} parent=1 // pred_region
      %637 = dma.done [#allocation4], 128
    $region61: #{tpu_custom_call.1} parent=1 // pred_fallthru
      _
    %638 = vsyncpa [#allocation3], 1
    %639 = vsyncpa [#allocation6], 1
    %640 = vsyncpa [#allocation4], 1

</llo_original>
